<compile_context>
chip_gen: v6e
topology: v6e:2x2x1
jax: 0.10.0
libtpu: 0.0.40
codegen_flags: <defaults>
</compile_context>

<pallas_src>
import math
import functools

import jax
import jax.numpy as jnp
from jax import lax
from jax.experimental import pallas as pl
from jax.experimental.pallas import tpu as pltpu


def _attn_dropout_kernel(seed_ref, q_ref, k_ref, v_ref, mask_ref, o_ref,
                         *, scale, p_drop, use_tpu_prng):
    idx = pl.program_id(0)            # flattened (b*H + h) head index
    S = q_ref.shape[1]

    q = q_ref[0]                      # (S, D) f32
    k = k_ref[0]                      # (S, D) f32
    v = v_ref[0]                      # (S, D) f32
    m = mask_ref[...]                 # (S, S) f32 (broadcast over batch & heads)

    # ---- scaled QK^T + additive mask (MXU, bf16 inputs, f32 accumulate) ----
    q_bf = (q * jnp.float32(scale)).astype(jnp.bfloat16)
    k_bf = k.astype(jnp.bfloat16)
    s = lax.dot_general(q_bf, k_bf, (((1,), (1,)), ((), ())),
                        preferred_element_type=jnp.float32)
    s = s + m

    # ---- softmax (unnormalized numerator + row sums) ----
    s_max = jnp.max(s, axis=-1, keepdims=True)
    p = jnp.exp(s - s_max)                          # (S, S)
    denom = jnp.sum(p, axis=-1, keepdims=True)      # (S, 1)

    # ---- dropout keep mask: integer threshold compare on raw uint32 bits ----
    threshold = jnp.uint32(min(int(p_drop * 4294967296.0), 4294967295))
    if use_tpu_prng:
        pltpu.prng_seed(seed_ref[0] + idx)
        bits = pltpu.prng_random_bits((S, S))
        if bits.dtype != jnp.uint32:
            bits = pltpu.bitcast(bits, jnp.uint32)
    else:
        # Portable counter-hash fallback (interpret mode / non-TPU backends).
        row = lax.broadcasted_iota(jnp.uint32, (S, S), 0)
        col = lax.broadcasted_iota(jnp.uint32, (S, S), 1)
        base = (seed_ref[0] + idx).astype(jnp.uint32) * jnp.uint32(0x9E3779B1)
        x = row * jnp.uint32(S) + col + base
        x = x ^ (x >> 16)
        x = x * jnp.uint32(0x7FEB352D)
        x = x ^ (x >> 15)
        x = x * jnp.uint32(0x846CA68B)
        x = x ^ (x >> 16)
        bits = x
    keep = bits >= threshold

    # ---- fused softmax normalization + dropout rescale ----
    if use_tpu_prng:
        inv = pl.reciprocal(denom, approx=True)     # EUP, (S,1) only
    else:
        inv = 1.0 / denom
    inv = inv * jnp.float32(1.0 / (1.0 - p_drop))
    p = jnp.where(keep, p * inv, jnp.float32(0.0))

    # ---- attention output (MXU, bf16 inputs, f32 accumulate) ----
    out = jnp.dot(p.astype(jnp.bfloat16), v.astype(jnp.bfloat16),
                  preferred_element_type=jnp.float32)
    o_ref[0] = out.astype(o_ref.dtype)


def attention_dropout(query, key, value, attn_mask, *, p_drop=0.6, seed=0):
    B, H, S, D = query.shape
    assert key.shape == (B, H, S, D) and value.shape == (B, H, S, D)
    assert attn_mask.shape[-2:] == (S, S)
    scale = 1.0 / math.sqrt(D)

    q = query.reshape(B * H, S, D)
    k = key.reshape(B * H, S, D)
    v = value.reshape(B * H, S, D)
    m = attn_mask.reshape(S, S)

    use_tpu_prng = (jax.default_backend() == "tpu")
    kernel = functools.partial(_attn_dropout_kernel, scale=scale,
                               p_drop=p_drop, use_tpu_prng=use_tpu_prng)
    seed_arr = jnp.asarray([seed], dtype=jnp.int32)

    grid_spec = pltpu.PrefetchScalarGridSpec(
        num_scalar_prefetch=1,
        grid=(B * H,),
        in_specs=[
            pl.BlockSpec((1, S, D), lambda i, seed: (i, 0, 0)),   # query head
            pl.BlockSpec((1, S, D), lambda i, seed: (i, 0, 0)),   # key head
            pl.BlockSpec((1, S, D), lambda i, seed: (i, 0, 0)),   # value head
            pl.BlockSpec((S, S), lambda i, seed: (0, 0)),         # mask (resident)
        ],
        out_specs=pl.BlockSpec((1, S, D), lambda i, seed: (i, 0, 0)),
    )

    out = pl.pallas_call(
        kernel,
        out_shape=jax.ShapeDtypeStruct((B * H, S, D), jnp.float32),
        grid_spec=grid_spec,
        compiler_params=pltpu.CompilerParams(
            dimension_semantics=("parallel",)),
    )(seed_arr, q, k, v, m)
    return out.reshape(B, H, S, D)


if __name__ == "__main__":
    # Small shapes consistent with the module's forward (batch, heads, seq, head_dim).
    # D=128 keeps the per-head output stores lane-dense.
    B, H, S, D = 1, 2, 128, 128
    k0 = jax.random.PRNGKey(0)
    kq, kk, kv, km = jax.random.split(k0, 4)
    query = jax.random.normal(kq, (B, H, S, D), dtype=jnp.float32)
    key = jax.random.normal(kk, (B, H, S, D), dtype=jnp.float32)
    value = jax.random.normal(kv, (B, H, S, D), dtype=jnp.float32)
    attn_mask = jax.random.normal(km, (1, 1, S, S), dtype=jnp.float32)

    out = attention_dropout(query, key, value, attn_mask, p_drop=0.6, seed=0)
    out = jax.block_until_ready(out)
    assert out.shape == (B, H, S, D)
    assert bool(jnp.all(jnp.isfinite(out)))
    print("KERNEL_OK")
</pallas_src>

<mosaic_0001>
module attributes {stable_mosaic.version = 11 : i64} {
  func.func @_attn_dropout_kernel(%arg0: i32, %arg1: memref<1xi32, #tpu.memory_space<smem>>, %arg2: memref<1x128x128xf32, #tpu.memory_space<vmem>>, %arg3: memref<1x128x128xf32, #tpu.memory_space<vmem>>, %arg4: memref<1x128x128xf32, #tpu.memory_space<vmem>>, %arg5: memref<128x128xf32, #tpu.memory_space<vmem>>, %arg6: memref<1x128x128xf32, #tpu.memory_space<vmem>>) attributes {dimension_semantics = [#tpu.dimension_semantics<parallel>], iteration_bounds = array<i64: 2>, scalar_prefetch = 1 : i64, scratch_operands = 0 : i64, tpu.core_type = #tpu.core_type<tc>, window_params = [{transform_indices = @transform_0, window_bounds = array<i64: 1, 128, 128>}, {transform_indices = @transform_1, window_bounds = array<i64: 1, 128, 128>}, {transform_indices = @transform_2, window_bounds = array<i64: 1, 128, 128>}, {pipeline_mode = #tpu.pipeline_mode<synchronous>, transform_indices = @transform_3, window_bounds = array<i64: 128, 128>}, {transform_indices = @transform_4, window_bounds = array<i64: 1, 128, 128>}]} {
    %c0 = arith.constant 0 : index
    %c0_0 = arith.constant 0 : index
    %c0_1 = arith.constant 0 : index
    %0 = vector.load %arg2[%c0, %c0_0, %c0_1] : memref<1x128x128xf32, #tpu.memory_space<vmem>>, vector<1x128x128xf32>
    %1 = vector.shape_cast %0 : vector<1x128x128xf32> to vector<128x128xf32>
    %c0_2 = arith.constant 0 : index
    %c0_3 = arith.constant 0 : index
    %c0_4 = arith.constant 0 : index
    %2 = vector.load %arg3[%c0_2, %c0_3, %c0_4] : memref<1x128x128xf32, #tpu.memory_space<vmem>>, vector<1x128x128xf32>
    %3 = vector.shape_cast %2 : vector<1x128x128xf32> to vector<128x128xf32>
    %c0_5 = arith.constant 0 : index
    %c0_6 = arith.constant 0 : index
    %c0_7 = arith.constant 0 : index
    %4 = vector.load %arg4[%c0_5, %c0_6, %c0_7] : memref<1x128x128xf32, #tpu.memory_space<vmem>>, vector<1x128x128xf32>
    %5 = vector.shape_cast %4 : vector<1x128x128xf32> to vector<128x128xf32>
    %c0_8 = arith.constant 0 : index
    %c0_9 = arith.constant 0 : index
    %6 = vector.load %arg5[%c0_8, %c0_9] : memref<128x128xf32, #tpu.memory_space<vmem>>, vector<128x128xf32>
    %cst = arith.constant 0.0883883461 : f32
    %7 = vector.broadcast %cst : f32 to vector<128x128xf32>
    %8 = arith.mulf %1, %7 : vector<128x128xf32>
    %9 = arith.truncf %8 : vector<128x128xf32> to vector<128x128xbf16>
    %10 = arith.truncf %3 : vector<128x128xf32> to vector<128x128xbf16>
    %cst_10 = arith.constant dense<0.000000e+00> : vector<128x128xf32>
    %11 = tpu.matmul %9, %10, %cst_10 {dimension_numbers = #tpu.dot_dimension_numbers<[1], [1], [0], [0], [0, 0, 1, 0], [], []>} : vector<128x128xbf16>, vector<128x128xbf16>, vector<128x128xf32> -> vector<128x128xf32>
    %12 = arith.addf %11, %6 : vector<128x128xf32>
    %cst_11 = arith.constant dense<0xFF800000> : vector<128xf32>
    %13 = vector.multi_reduction <maximumf>, %12, %cst_11 [1] : vector<128x128xf32> to vector<128xf32>
    %14 = vector.shape_cast %13 : vector<128xf32> to vector<128x1xf32>
    %15 = vector.broadcast %14 : vector<128x1xf32> to vector<128x128xf32>
    %16 = arith.subf %12, %15 : vector<128x128xf32>
    %17 = math.exp %16 : vector<128x128xf32>
    %cst_12 = arith.constant dense<0.000000e+00> : vector<128xf32>
    %18 = vector.multi_reduction <add>, %17, %cst_12 [1] : vector<128x128xf32> to vector<128xf32>
    %19 = vector.shape_cast %18 : vector<128xf32> to vector<128x1xf32>
    %20 = tpu.iota {dimensions = array<i32: 0>} : vector<128x128xi32>
    %21 = tpu.iota {dimensions = array<i32: 1>} : vector<128x128xi32>
    %c0_13 = arith.constant 0 : index
    %22 = memref.load %arg1[%c0_13] : memref<1xi32, #tpu.memory_space<smem>>
    %23 = arith.addi %22, %arg0 : i32
    %c-1640531535_i32 = arith.constant -1640531535 : i32
    %24 = arith.muli %23, %c-1640531535_i32 : i32
    %c128_i32 = arith.constant 128 : i32
    %25 = vector.broadcast %c128_i32 : i32 to vector<128x128xi32>
    %26 = arith.muli %20, %25 : vector<128x128xi32>
    %27 = arith.addi %26, %21 : vector<128x128xi32>
    %28 = vector.broadcast %24 : i32 to vector<128x128xi32>
    %29 = arith.addi %27, %28 : vector<128x128xi32>
    %c16_i32 = arith.constant 16 : i32
    %30 = vector.broadcast %c16_i32 : i32 to vector<128x128xi32>
    %31 = arith.shrui %29, %30 : vector<128x128xi32>
    %32 = arith.xori %29, %31 : vector<128x128xi32>
    %c2146121005_i32 = arith.constant 2146121005 : i32
    %33 = vector.broadcast %c2146121005_i32 : i32 to vector<128x128xi32>
    %34 = arith.muli %32, %33 : vector<128x128xi32>
    %c15_i32 = arith.constant 15 : i32
    %35 = vector.broadcast %c15_i32 : i32 to vector<128x128xi32>
    %36 = arith.shrui %34, %35 : vector<128x128xi32>
    %37 = arith.xori %34, %36 : vector<128x128xi32>
    %c-2073254261_i32 = arith.constant -2073254261 : i32
    %38 = vector.broadcast %c-2073254261_i32 : i32 to vector<128x128xi32>
    %39 = arith.muli %37, %38 : vector<128x128xi32>
    %c16_i32_14 = arith.constant 16 : i32
    %40 = vector.broadcast %c16_i32_14 : i32 to vector<128x128xi32>
    %41 = arith.shrui %39, %40 : vector<128x128xi32>
    %42 = arith.xori %39, %41 : vector<128x128xi32>
    %c-1717986919_i32 = arith.constant -1717986919 : i32
    %43 = vector.broadcast %c-1717986919_i32 : i32 to vector<128x128xi32>
    %44 = arith.cmpi uge, %42, %43 : vector<128x128xi32>
    %cst_15 = arith.constant 1.000000e+00 : f32
    %45 = vector.broadcast %cst_15 : f32 to vector<128x1xf32>
    %46 = arith.divf %45, %19 : vector<128x1xf32>
    %cst_16 = arith.constant 2.500000e+00 : f32
    %47 = vector.broadcast %cst_16 : f32 to vector<128x1xf32>
    %48 = arith.mulf %46, %47 : vector<128x1xf32>
    %49 = vector.broadcast %48 : vector<128x1xf32> to vector<128x128xf32>
    %50 = arith.mulf %17, %49 : vector<128x128xf32>
    %cst_17 = arith.constant 0.000000e+00 : f32
    %51 = vector.broadcast %cst_17 : f32 to vector<128x128xf32>
    %52 = arith.select %44, %50, %51 : vector<128x128xi1>, vector<128x128xf32>
    %53 = arith.truncf %52 : vector<128x128xf32> to vector<128x128xbf16>
    %54 = arith.truncf %5 : vector<128x128xf32> to vector<128x128xbf16>
    %cst_18 = arith.constant dense<0.000000e+00> : vector<128x128xf32>
    %55 = tpu.matmul %53, %54, %cst_18 {dimension_numbers = #tpu.dot_dimension_numbers<[1], [0], [0], [1], [0, 0, 1, 1], [], []>} : vector<128x128xbf16>, vector<128x128xbf16>, vector<128x128xf32> -> vector<128x128xf32>
    %c0_19 = arith.constant 0 : index
    %c0_20 = arith.constant 0 : index
    %c0_21 = arith.constant 0 : index
    %56 = vector.load %arg6[%c0_19, %c0_20, %c0_21] : memref<1x128x128xf32, #tpu.memory_space<vmem>>, vector<1x128x128xf32>
    %57 = vector.shape_cast %56 : vector<1x128x128xf32> to vector<128x128xf32>
    %58 = vector.shape_cast %55 : vector<128x128xf32> to vector<1x128x128xf32>
    tpu.vector_store %arg6[%c0_19, %c0_20, %c0_21], %58 {strides = array<i32>} : memref<1x128x128xf32, #tpu.memory_space<vmem>>, vector<1x128x128xf32>,
    return
  }
  func.func @transform_0(%arg0: i32, %arg1: memref<1xi32, #tpu.memory_space<smem>>) -> (i32, i32, i32) {
    %c0_i32 = arith.constant 0 : i32
    %c0_i32_0 = arith.constant 0 : i32
    %c0_i32_1 = arith.constant 0 : i32
    return %arg0, %c0_i32, %c0_i32_0 : i32, i32, i32
  }
  func.func @transform_1(%arg0: i32, %arg1: memref<1xi32, #tpu.memory_space<smem>>) -> (i32, i32, i32) {
    %c0_i32 = arith.constant 0 : i32
    %c0_i32_0 = arith.constant 0 : i32
    %c0_i32_1 = arith.constant 0 : i32
    return %arg0, %c0_i32, %c0_i32_0 : i32, i32, i32
  }
  func.func @transform_2(%arg0: i32, %arg1: memref<1xi32, #tpu.memory_space<smem>>) -> (i32, i32, i32) {
    %c0_i32 = arith.constant 0 : i32
    %c0_i32_0 = arith.constant 0 : i32
    %c0_i32_1 = arith.constant 0 : i32
    return %arg0, %c0_i32, %c0_i32_0 : i32, i32, i32
  }
  func.func @transform_3(%arg0: i32, %arg1: memref<1xi32, #tpu.memory_space<smem>>) -> (i32, i32) {
    %c0_i32 = arith.constant 0 : i32
    %c0_i32_0 = arith.constant 0 : i32
    %c0_i32_1 = arith.constant 0 : i32
    return %c0_i32, %c0_i32_0 : i32, i32
  }
  func.func @transform_4(%arg0: i32, %arg1: memref<1xi32, #tpu.memory_space<smem>>) -> (i32, i32, i32) {
    %c0_i32 = arith.constant 0 : i32
    %c0_i32_0 = arith.constant 0 : i32
    %c0_i32_1 = arith.constant 0 : i32
    return %arg0, %c0_i32, %c0_i32_0 : i32, i32, i32
  }
}

</mosaic_0001>

<llo_original>
// kernel: tpu_custom_call.1
$region0: #{tpu_custom_call.1}
  #allocation0 [shape = 'u32[]', space=smem, size = 0x4, offset = 0x4, fixed_abs, tag = 'smem constant byte address 0x4 - core index']
  #allocation1 [shape = 'u32[144,128]{1,0:T(1,128)}', space=vmem, size = 0x12000, scoped, tag = 'internal scratch']
  #allocation2 [shape = 's32[1]{0}', space=sflag, size = 0x4, scoped, tag = 'scoped memory for tpu_custom_call.1']
  #allocation3 [shape = 's32[1]{0:T(128)S(6)}', space=smem, size = 0x200, scoped, tag = 'prefetched SMEM operand 0']
  %s0 = inlined_call_operand.<no memory space> [shape: s32[1], index: 0, kind: input, shape index: {}]
  %s1 = inlined_call_operand.hbm [shape: f32[2,128,128], index: 1, kind: input, shape index: {}]
  %s2 = inlined_call_operand.hbm [shape: f32[2,128,128], index: 2, kind: input, shape index: {}]
  %s3 = inlined_call_operand.hbm [shape: f32[2,128,128], index: 3, kind: input, shape index: {}]
  %s4 = inlined_call_operand.hbm [shape: f32[128,128], index: 4, kind: input, shape index: {}]
  %s5 = inlined_call_operand.hbm [shape: f32[2,128,128], index: 5, kind: output, shape index: {}]
  %s6 = sld [smem:[#allocation0]]
  $region65: #{tpu_custom_call.1} parent=0
    _
  %s8 = ssub.s32 1, %s6
  %s9 = scalar_select 0, %s8, %s6
  %10 = sst [smem:[#allocation3]] %s0
  $region1: #{tpu_custom_call.1} parent=0
    #allocation4 [shape = 'u8[131072]{0}', space=vmem, size = 0x20000, scoped, tag = 'input window, operand 1']
    #allocation5 [shape = 's32[2]{0}', space=sflag, size = 0x8, scoped, tag = 'scoped memory for tpu_custom_call.1']
    #allocation6 [shape = 's32[2]{0}', space=sflag, size = 0x8, scoped, tag = 'scoped memory for tpu_custom_call.1']
    #allocation7 [shape = 'u8[131072]{0}', space=vmem, size = 0x20000, scoped, tag = 'input window, operand 2']
    #allocation8 [shape = 's32[2]{0}', space=sflag, size = 0x8, scoped, tag = 'scoped memory for tpu_custom_call.1']
    #allocation9 [shape = 'u8[131072]{0}', space=vmem, size = 0x20000, scoped, tag = 'input window, operand 3']
    #allocation10 [shape = 'u8[65536]{0}', space=vmem, size = 0x10000, scoped, tag = 'input window, operand 4, single buffered']
    #allocation11 [shape = 's32[1]{0}', space=sflag, size = 0x4, scoped, tag = 'scoped memory for tpu_custom_call.1']
    #allocation12 [shape = 'u8[131072]{0}', space=vmem, size = 0x20000, scoped, tag = 'output window, operand 0']
    %11 = vsyncpa [#allocation5], 0
    %s12 = scalar_lea.sflag [#allocation5], 1
    %13 = vsyncpa %s12, 0
    %14 = vsyncpa [#allocation8], 0
    %s15 = scalar_lea.sflag [#allocation8], 1
    %16 = vsyncpa %s15, 0
    %17 = vsyncpa [#allocation11], 0
    %18 = vsyncpa [#allocation6], 0
    %s19 = scalar_lea.sflag [#allocation6], 1
    %20 = vsyncpa %s19, 0
    loop: start=0, step=1, limit=4
    $region2: #{tpu_custom_call.1} parent=1 // loop_pre_header
      _
    $region3: #{tpu_custom_call.1} parent=1 // loop_header
      %s22 = sphi 0, %s26
      %p23 = scmp.ge.s32.totalorder %s22, 4
      %s32 = sphi 0, %s34
      %s35 = sphi 0, %s32
      %s36 = sphi 0, %s35
      %s52 = sphi 0, %s36
      %s58 = sphi 0, %s60
      %s61 = sphi 0, %s58
      %s62 = sphi 0, %s61
      %s78 = sphi 0, %s62
      %s84 = sphi 0, %s86
      %s87 = sphi 0, %s84
      %s88 = sphi 0, %s87
      %s104 = sphi 0, %s88
      %s108 = sphi 0, %s108
      %s110 = sphi 0, %s108
      %s111 = sphi 0, %s110
      %s125 = sphi 0, %s111
      %s131 = sphi 0, %s133
      %s134 = sphi 0, %s131
      %s135 = sphi 0, %s134
      %s151 = sphi 0, %s135
    $region4: #{tpu_custom_call.1} parent=1 // loop_header_branch
      %25 = sbr.rel (%p23) target = $region8
    $region5: #{tpu_custom_call.1} parent=1 // loop_body
      %s27 = ssub.s32 %s22, 1
      %s28 = ssub.s32 %s22, 2
      %s29 = sadd.s32 %s22, 1
      %s30 = ssub.s32 %s22, %s29
      %p31 = scmp.eq.s32.totalorder %s30, 0
      %s33 = sadd.s32 %s32, 1
      %s34 = scalar_select %p31, %s32, %s33
      %p37 = pneg %p31
      %p38 = scmp.eq.s32.totalorder %s22, 1
      %p39 = por %p37, %p38
      %p40 = scmp.ne.s32.totalorder %s32, %s35
      %p41 = scmp.eq.s32.totalorder %s22, 0
      %p42 = por %p40, %p41
      %p43 = scmp.ne.s32.totalorder %s32, %s35
      %p44 = scmp.eq.s32.totalorder %s27, 1
      %p45 = por %p43, %p44
      %p46 = scmp.ne.s32.totalorder %s35, %s36
      %p47 = scmp.eq.s32.totalorder %s27, 0
      %p48 = por %p46, %p47
      %p49 = scmp.ne.s32.totalorder %s35, %s36
      %p50 = scmp.eq.s32.totalorder %s28, 1
      %p51 = por %p49, %p50
      %p53 = scmp.ne.s32.totalorder %s36, %s52
      %p54 = scmp.eq.s32.totalorder %s28, 0
      %p55 = por %p53, %p54
      %s56 = ssub.s32 %s22, %s29
      %p57 = scmp.eq.s32.totalorder %s56, 0
      %s59 = sadd.s32 %s58, 1
      %s60 = scalar_select %p57, %s58, %s59
      %p63 = pneg %p57
      %p64 = scmp.eq.s32.totalorder %s22, 1
      %p65 = por %p63, %p64
      %p66 = scmp.ne.s32.totalorder %s58, %s61
      %p67 = scmp.eq.s32.totalorder %s22, 0
      %p68 = por %p66, %p67
      %p69 = scmp.ne.s32.totalorder %s58, %s61
      %p70 = scmp.eq.s32.totalorder %s27, 1
      %p71 = por %p69, %p70
      %p72 = scmp.ne.s32.totalorder %s61, %s62
      %p73 = scmp.eq.s32.totalorder %s27, 0
      %p74 = por %p72, %p73
      %p75 = scmp.ne.s32.totalorder %s61, %s62
      %p76 = scmp.eq.s32.totalorder %s28, 1
      %p77 = por %p75, %p76
      %p79 = scmp.ne.s32.totalorder %s62, %s78
      %p80 = scmp.eq.s32.totalorder %s28, 0
      %p81 = por %p79, %p80
      %s82 = ssub.s32 %s22, %s29
      %p83 = scmp.eq.s32.totalorder %s82, 0
      %s85 = sadd.s32 %s84, 1
      %s86 = scalar_select %p83, %s84, %s85
      %p89 = pneg %p83
      %p90 = scmp.eq.s32.totalorder %s22, 1
      %p91 = por %p89, %p90
      %p92 = scmp.ne.s32.totalorder %s84, %s87
      %p93 = scmp.eq.s32.totalorder %s22, 0
      %p94 = por %p92, %p93
      %p95 = scmp.ne.s32.totalorder %s84, %s87
      %p96 = scmp.eq.s32.totalorder %s27, 1
      %p97 = por %p95, %p96
      %p98 = scmp.ne.s32.totalorder %s87, %s88
      %p99 = scmp.eq.s32.totalorder %s27, 0
      %p100 = por %p98, %p99
      %p101 = scmp.ne.s32.totalorder %s87, %s88
      %p102 = scmp.eq.s32.totalorder %s28, 1
      %p103 = por %p101, %p102
      %p105 = scmp.ne.s32.totalorder %s88, %s104
      %p106 = scmp.eq.s32.totalorder %s28, 0
      %p107 = por %p105, %p106
      %s109 = sadd.s32 %s108, 1
      %p112 = scmp.eq.s32.totalorder %s22, 1
      %p113 = scmp.ne.s32.totalorder %s108, %s110
      %p114 = scmp.eq.s32.totalorder %s22, 0
      %p115 = por %p113, %p114
      %p116 = scmp.ne.s32.totalorder %s108, %s110
      %p117 = scmp.eq.s32.totalorder %s27, 1
      %p118 = por %p116, %p117
      %p119 = scmp.ne.s32.totalorder %s110, %s111
      %p120 = scmp.eq.s32.totalorder %s27, 0
      %p121 = por %p119, %p120
      %p122 = scmp.ne.s32.totalorder %s110, %s111
      %p123 = scmp.eq.s32.totalorder %s28, 1
      %p124 = por %p122, %p123
      %p126 = scmp.ne.s32.totalorder %s111, %s125
      %p127 = scmp.eq.s32.totalorder %s28, 0
      %p128 = por %p126, %p127
      %s129 = ssub.s32 %s22, %s29
      %p130 = scmp.eq.s32.totalorder %s129, 0
      %s132 = sadd.s32 %s131, 1
      %s133 = scalar_select %p130, %s131, %s132
      %p136 = pneg %p130
      %p137 = scmp.eq.s32.totalorder %s22, 1
      %p138 = por %p136, %p137
      %p139 = scmp.ne.s32.totalorder %s131, %s134
      %p140 = scmp.eq.s32.totalorder %s22, 0
      %p141 = por %p139, %p140
      %p142 = scmp.ne.s32.totalorder %s131, %s134
      %p143 = scmp.eq.s32.totalorder %s27, 1
      %p144 = por %p142, %p143
      %p145 = scmp.ne.s32.totalorder %s134, %s135
      %p146 = scmp.eq.s32.totalorder %s27, 0
      %p147 = por %p145, %p146
      %p148 = scmp.ne.s32.totalorder %s134, %s135
      %p149 = scmp.eq.s32.totalorder %s28, 1
      %p150 = por %p148, %p149
      %p152 = scmp.ne.s32.totalorder %s135, %s151
      %p153 = scmp.eq.s32.totalorder %s28, 0
      %p154 = por %p152, %p153
      %p155 = scmp.le.s32.totalorder 1, %s22
      %p156 = scmp.lt.s32.totalorder %s22, 3
      %p157 = pnand %p155, %p156
      %p158 = pneg %p157
      // Predicated region
      $region9: #{tpu_custom_call.1} parent=5 // pred_check
        _
      $region10: #{tpu_custom_call.1} parent=5 // pred_check_branch
        %160 = sbr.rel (%p157) target = $region12
      $region11: #{tpu_custom_call.1} parent=5 // pred_region
        %s161 = ssub.s32 %s22, 1
        // Predicated region
        $region13: #{tpu_custom_call.1} parent=11 // pred_check
          %p162 = pneg %p121
        $region14: #{tpu_custom_call.1} parent=11 // pred_check_branch
          %164 = sbr.rel (%p162) target = $region16
        $region15: #{tpu_custom_call.1} parent=11 // pred_region
          %s166 = ssub.s32 2048, 2048
          %167 = vsyncadd [#allocation11], %s166
          %s168 = sshll.u32 [#allocation10], 4
          %s169 = int_to_ptr.vmem [resolvable:$true] %s168
          %174 = dma.hbm_to_vmem [thread:$0]  %s4, 2048, %s169, [#allocation11], 128, 128, 8
        $region16: #{tpu_custom_call.1} parent=11 // pred_fallthru
          _
      $region12: #{tpu_custom_call.1} parent=5 // pred_fallthru
        _
      %p175 = scmp.lt.s32.totalorder %s22, 2
      // Predicated region
      $region17: #{tpu_custom_call.1} parent=5 // pred_check
        %p176 = pneg %p175
      $region18: #{tpu_custom_call.1} parent=5 // pred_check_branch
        %178 = sbr.rel (%p176) target = $region20
      $region19: #{tpu_custom_call.1} parent=5 // pred_region
        // Predicated region
        $region21: #{tpu_custom_call.1} parent=19 // pred_check
          %p179 = pneg %p42
        $region22: #{tpu_custom_call.1} parent=19 // pred_check_branch
          %181 = sbr.rel (%p179) target = $region24
        $region23: #{tpu_custom_call.1} parent=19 // pred_region
          %s182 = sand.u32 %s32, 1
          %s183 = scalar_lea.sflag [#allocation5], %s182
          %s184 = sand.u32 %s32, 1
          %s185 = smul.addr %s184, 128
          %s186 = scalar_lea.vmem [#allocation4], %s185
          %s188 = ssub.s32 2048, 2048
          %189 = vsyncadd %s183, %s188
          %s190 = smul.addr %s22, 16
          %s191 = smul.addr %s190, 128
          %s192 = scalar_lea.hbm %s1, %s191
          %s193 = sshll.u32 %s186, 4
          %s194 = int_to_ptr.vmem [resolvable:$true] %s193
          %199 = dma.hbm_to_vmem [thread:$0]  %s192, 2048, %s194, %s183, 128, 128, 8
        $region24: #{tpu_custom_call.1} parent=19 // pred_fallthru
          _
        // Predicated region
        $region25: #{tpu_custom_call.1} parent=19 // pred_check
          %p200 = pneg %p68
        $region26: #{tpu_custom_call.1} parent=19 // pred_check_branch
          %202 = sbr.rel (%p200) target = $region28
        $region27: #{tpu_custom_call.1} parent=19 // pred_region
          %s203 = sand.u32 %s22, 1
          %s204 = scalar_lea.sflag [#allocation8], %s203
          %s205 = sand.u32 %s58, 1
          %s206 = smul.addr %s205, 128
          %s207 = scalar_lea.vmem [#allocation7], %s206
          %s209 = ssub.s32 2048, 2048
          %210 = vsyncadd %s204, %s209
          %s211 = smul.addr %s22, 16
          %s212 = smul.addr %s211, 128
          %s213 = scalar_lea.hbm %s2, %s212
          %s214 = sshll.u32 %s207, 4
          %s215 = int_to_ptr.vmem [resolvable:$true] %s214
          %220 = dma.hbm_to_vmem [thread:$0]  %s213, 2048, %s215, %s204, 128, 128, 8
        $region28: #{tpu_custom_call.1} parent=19 // pred_fallthru
          _
        // Predicated region
        $region29: #{tpu_custom_call.1} parent=19 // pred_check
          %p221 = pneg %p94
        $region30: #{tpu_custom_call.1} parent=19 // pred_check_branch
          %223 = sbr.rel (%p221) target = $region32
        $region31: #{tpu_custom_call.1} parent=19 // pred_region
          %s224 = sand.u32 %s22, 1
          %s225 = scalar_lea.sflag [#allocation8], %s224
          %s226 = sand.u32 %s84, 1
          %s227 = smul.addr %s226, 128
          %s228 = scalar_lea.vmem [#allocation9], %s227
          %s230 = ssub.s32 2048, 2048
          %231 = vsyncadd %s225, %s230
          %s232 = smul.addr %s22, 16
          %s233 = smul.addr %s232, 128
          %s234 = scalar_lea.hbm %s3, %s233
          %s235 = sshll.u32 %s228, 4
          %s236 = int_to_ptr.vmem [resolvable:$true] %s235
          %241 = dma.hbm_to_vmem [thread:$0]  %s234, 2048, %s236, %s225, 128, 128, 8
        $region32: #{tpu_custom_call.1} parent=19 // pred_fallthru
          _
      $region20: #{tpu_custom_call.1} parent=5 // pred_fallthru
        _
      %p242 = scmp.le.s32.totalorder 1, %s22
      %p243 = scmp.lt.s32.totalorder %s22, 3
      %p244 = pnand %p242, %p243
      %p245 = pneg %p244
      // Predicated region
      $region33: #{tpu_custom_call.1} parent=5 // pred_check
        _
      $region34: #{tpu_custom_call.1} parent=5 // pred_check_branch
        %247 = sbr.rel (%p244) target = $region36
      $region35: #{tpu_custom_call.1} parent=5 // pred_region
        %s248 = ssub.s32 %s22, 1
        %s249 = sand.u32 %s35, 1
        %s250 = scalar_lea.sflag [#allocation5], %s249
        %s251 = sand.u32 %s35, 1
        %s252 = smul.addr %s251, 128
        %s253 = scalar_lea.vmem [#allocation4], %s252
        // Predicated region
        $region37: #{tpu_custom_call.1} parent=35 // pred_check
          %p254 = pneg %p48
        $region38: #{tpu_custom_call.1} parent=35 // pred_check_branch
          %256 = sbr.rel (%p254) target = $region40
        $region39: #{tpu_custom_call.1} parent=35 // pred_region
          %257 = dma.done %s250, 2048
        $region40: #{tpu_custom_call.1} parent=35 // pred_fallthru
          _
        %s258 = sand.u32 %s27, 1
        %s259 = scalar_lea.sflag [#allocation8], %s258
        %s260 = sand.u32 %s61, 1
        %s261 = smul.addr %s260, 128
        %s262 = scalar_lea.vmem [#allocation7], %s261
        // Predicated region
        $region41: #{tpu_custom_call.1} parent=35 // pred_check
          %p263 = pneg %p74
        $region42: #{tpu_custom_call.1} parent=35 // pred_check_branch
          %265 = sbr.rel (%p263) target = $region44
        $region43: #{tpu_custom_call.1} parent=35 // pred_region
          %266 = dma.done %s259, 2048
        $region44: #{tpu_custom_call.1} parent=35 // pred_fallthru
          _
        %s267 = sand.u32 %s27, 1
        %s268 = scalar_lea.sflag [#allocation8], %s267
        %s269 = sand.u32 %s87, 1
        %s270 = smul.addr %s269, 128
        %s271 = scalar_lea.vmem [#allocation9], %s270
        // Predicated region
        $region45: #{tpu_custom_call.1} parent=35 // pred_check
          %p272 = pneg %p100
        $region46: #{tpu_custom_call.1} parent=35 // pred_check_branch
          %274 = sbr.rel (%p272) target = $region48
        $region47: #{tpu_custom_call.1} parent=35 // pred_region
          %275 = dma.done %s268, 2048
        $region48: #{tpu_custom_call.1} parent=35 // pred_fallthru
          _
        // Predicated region
        $region49: #{tpu_custom_call.1} parent=35 // pred_check
          %p276 = pneg %p121
        $region50: #{tpu_custom_call.1} parent=35 // pred_check_branch
          %278 = sbr.rel (%p276) target = $region52
        $region51: #{tpu_custom_call.1} parent=35 // pred_region
          %279 = dma.done [#allocation11], 2048
        $region52: #{tpu_custom_call.1} parent=35 // pred_fallthru
          _
        %s280 = sand.u32 %s35, 1
        %s281 = scalar_lea.sflag [#allocation5], %s280
        %s282 = sand.u32 %s35, 1
        %s283 = smul.addr %s282, 128
        %s284 = scalar_lea.vmem [#allocation4], %s283
        %p285 = pneg %p48
        %p286 = pneg %p45
        %s287 = sand.u32 %s27, 1
        %s288 = scalar_lea.sflag [#allocation8], %s287
        %s289 = sand.u32 %s61, 1
        %s290 = smul.addr %s289, 128
        %s291 = scalar_lea.vmem [#allocation7], %s290
        %p292 = pneg %p74
        %p293 = pneg %p71
        %s294 = sand.u32 %s27, 1
        %s295 = scalar_lea.sflag [#allocation8], %s294
        %s296 = sand.u32 %s87, 1
        %s297 = smul.addr %s296, 128
        %s298 = scalar_lea.vmem [#allocation9], %s297
        %p299 = pneg %p100
        %p300 = pneg %p97
        %p301 = pneg %p121
        %p302 = pneg %p118
        %p303 = pneg %p147
        %p304 = pneg %p144
        %s305 = sand.u32 %s134, 1
        %s306 = scalar_lea.sflag [#allocation6], %s305
        %s307 = sand.u32 %s134, 1
        %s308 = smul.addr %s307, 128
        %s309 = scalar_lea.vmem [#allocation12], %s308
        %v311 = vld [vmem:[%s253] sm:$0xff]
        %v312 = vld [vmem:[%s253 + $0x8] sm:$0xff]
        %v313 = vld [vmem:[%s253 + $0x10] sm:$0xff]
        %v314 = vld [vmem:[%s253 + $0x18] sm:$0xff]
        %v315 = vld [vmem:[%s253 + $0x20] sm:$0xff]
        %v316 = vld [vmem:[%s253 + $0x28] sm:$0xff]
        %v317 = vld [vmem:[%s253 + $0x30] sm:$0xff]
        %v318 = vld [vmem:[%s253 + $0x38] sm:$0xff]
        %v319 = vld [vmem:[%s253 + $0x40] sm:$0xff]
        %v320 = vld [vmem:[%s253 + $0x48] sm:$0xff]
        %v321 = vld [vmem:[%s253 + $0x50] sm:$0xff]
        %v322 = vld [vmem:[%s253 + $0x58] sm:$0xff]
        %v323 = vld [vmem:[%s253 + $0x60] sm:$0xff]
        %v324 = vld [vmem:[%s253 + $0x68] sm:$0xff]
        %v325 = vld [vmem:[%s253 + $0x70] sm:$0xff]
        %v326 = vld [vmem:[%s253 + $0x78] sm:$0xff]
        %v327 = vld [vmem:[%s262] sm:$0xff]
        %v328 = vld [vmem:[%s262 + $0x8] sm:$0xff]
        %v329 = vld [vmem:[%s262 + $0x10] sm:$0xff]
        %v330 = vld [vmem:[%s262 + $0x18] sm:$0xff]
        %v331 = vld [vmem:[%s262 + $0x20] sm:$0xff]
        %v332 = vld [vmem:[%s262 + $0x28] sm:$0xff]
        %v333 = vld [vmem:[%s262 + $0x30] sm:$0xff]
        %v334 = vld [vmem:[%s262 + $0x38] sm:$0xff]
        %v335 = vld [vmem:[%s262 + $0x40] sm:$0xff]
        %v336 = vld [vmem:[%s262 + $0x48] sm:$0xff]
        %v337 = vld [vmem:[%s262 + $0x50] sm:$0xff]
        %v338 = vld [vmem:[%s262 + $0x58] sm:$0xff]
        %v339 = vld [vmem:[%s262 + $0x60] sm:$0xff]
        %v340 = vld [vmem:[%s262 + $0x68] sm:$0xff]
        %v341 = vld [vmem:[%s262 + $0x70] sm:$0xff]
        %v342 = vld [vmem:[%s262 + $0x78] sm:$0xff]
        %v343 = vld [vmem:[%s271] sm:$0xff]
        %v344 = vld [vmem:[%s271 + $0x8] sm:$0xff]
        %v345 = vld [vmem:[%s271 + $0x10] sm:$0xff]
        %v346 = vld [vmem:[%s271 + $0x18] sm:$0xff]
        %v347 = vld [vmem:[%s271 + $0x20] sm:$0xff]
        %v348 = vld [vmem:[%s271 + $0x28] sm:$0xff]
        %v349 = vld [vmem:[%s271 + $0x30] sm:$0xff]
        %v350 = vld [vmem:[%s271 + $0x38] sm:$0xff]
        %v351 = vld [vmem:[%s271 + $0x40] sm:$0xff]
        %v352 = vld [vmem:[%s271 + $0x48] sm:$0xff]
        %v353 = vld [vmem:[%s271 + $0x50] sm:$0xff]
        %v354 = vld [vmem:[%s271 + $0x58] sm:$0xff]
        %v355 = vld [vmem:[%s271 + $0x60] sm:$0xff]
        %v356 = vld [vmem:[%s271 + $0x68] sm:$0xff]
        %v357 = vld [vmem:[%s271 + $0x70] sm:$0xff]
        %v358 = vld [vmem:[%s271 + $0x78] sm:$0xff]
        %v359 = vld [vmem:[#allocation10] sm:$0xff]
        %v360 = vld [vmem:[#allocation10 + $0x8] sm:$0xff]
        %v361 = vld [vmem:[#allocation10 + $0x10] sm:$0xff]
        %v362 = vld [vmem:[#allocation10 + $0x18] sm:$0xff]
        %v363 = vld [vmem:[#allocation10 + $0x20] sm:$0xff]
        %v364 = vld [vmem:[#allocation10 + $0x28] sm:$0xff]
        %v365 = vld [vmem:[#allocation10 + $0x30] sm:$0xff]
        %v366 = vld [vmem:[#allocation10 + $0x38] sm:$0xff]
        %v367 = vld [vmem:[#allocation10 + $0x40] sm:$0xff]
        %v368 = vld [vmem:[#allocation10 + $0x48] sm:$0xff]
        %v369 = vld [vmem:[#allocation10 + $0x50] sm:$0xff]
        %v370 = vld [vmem:[#allocation10 + $0x58] sm:$0xff]
        %v371 = vld [vmem:[#allocation10 + $0x60] sm:$0xff]
        %v372 = vld [vmem:[#allocation10 + $0x68] sm:$0xff]
        %v373 = vld [vmem:[#allocation10 + $0x70] sm:$0xff]
        %v374 = vld [vmem:[#allocation10 + $0x78] sm:$0xff]
        %v375 = vmul.f32 %v311, 0.088388346
        %v376 = vmul.f32 %v312, 0.088388346
        %v377 = vmul.f32 %v313, 0.088388346
        %v378 = vmul.f32 %v314, 0.088388346
        %v379 = vmul.f32 %v315, 0.088388346
        %v380 = vmul.f32 %v316, 0.088388346
        %v381 = vmul.f32 %v317, 0.088388346
        %v382 = vmul.f32 %v318, 0.088388346
        %v383 = vmul.f32 %v319, 0.088388346
        %v384 = vmul.f32 %v320, 0.088388346
        %v385 = vmul.f32 %v321, 0.088388346
        %v386 = vmul.f32 %v322, 0.088388346
        %v387 = vmul.f32 %v323, 0.088388346
        %v388 = vmul.f32 %v324, 0.088388346
        %v389 = vmul.f32 %v325, 0.088388346
        %v390 = vmul.f32 %v326, 0.088388346
        %v391 = vpack.c.bf16 %v376, %v375
        %v392 = vpack.c.bf16 %v378, %v377
        %v393 = vpack.c.bf16 %v380, %v379
        %v394 = vpack.c.bf16 %v382, %v381
        %v395 = vpack.c.bf16 %v384, %v383
        %v396 = vpack.c.bf16 %v386, %v385
        %v397 = vpack.c.bf16 %v388, %v387
        %v398 = vpack.c.bf16 %v390, %v389
        %v399 = vpack.c.bf16 %v328, %v327
        %v400 = vpack.c.bf16 %v330, %v329
        %v401 = vpack.c.bf16 %v332, %v331
        %v402 = vpack.c.bf16 %v334, %v333
        %v403 = vpack.c.bf16 %v336, %v335
        %v404 = vpack.c.bf16 %v338, %v337
        %v405 = vpack.c.bf16 %v340, %v339
        %v406 = vpack.c.bf16 %v342, %v341
        %407 = vmatprep.subr.bf16.mxu0 0
        %408 = vmatpush1.bf16.xpose.msra.mxu0 %v406
        %409 = vmatprep.subr.bf16.mxu0 0
        %410 = vmatpush1.bf16.xpose.msra.mxu0 %v405
        %411 = vmatprep.subr.bf16.mxu0 0
        %412 = vmatpush1.bf16.xpose.msra.mxu0 %v404
        %413 = vmatprep.subr.bf16.mxu0 0
        %414 = vmatpush1.bf16.xpose.msra.mxu0 %v403
        %415 = vmatprep.subr.bf16.mxu0 0
        %416 = vmatpush1.bf16.xpose.msra.mxu0 %v402
        %417 = vmatprep.subr.bf16.mxu0 0
        %418 = vmatpush1.bf16.xpose.msra.mxu0 %v401
        %419 = vmatprep.subr.bf16.mxu0 0
        %420 = vmatpush1.bf16.xpose.msra.mxu0 %v400
        %421 = vmatprep.subr.bf16.mxu0 0
        %422 = vmatpush1.bf16.xpose.msra.mxu0 %v399
        %423 = vmatprep.subr.bf16.mxu0 0
        %424 = vmatpush2.bf16.xpose.msra.mxu0 0
        %425 = vmatprep.subr.bf16.mxu0 0
        %426 = vmatpush2.bf16.xpose.msra.mxu0 0
        %427 = vmatprep.subr.bf16.mxu0 0
        %428 = vmatpush2.bf16.xpose.msra.mxu0 0
        %429 = vmatprep.subr.bf16.mxu0 0
        %430 = vmatpush2.bf16.xpose.msra.mxu0 0
        %431 = vmatprep.subr.bf16.mxu0 0
        %432 = vmatpush2.bf16.xpose.msra.mxu0 0
        %433 = vmatprep.subr.bf16.mxu0 0
        %434 = vmatpush2.bf16.xpose.msra.mxu0 0
        %435 = vmatprep.subr.bf16.mxu0 0
        %436 = vmatpush2.bf16.xpose.msra.mxu0 0
        %437 = vmatprep.subr.bf16.mxu0 0
        %438 = vmatpush2.bf16.xpose.msra.mxu0 0
        %439 = vmatprep.mubr.bf16.mxu0 0
        %440 = vmatmul.mubr.bf16.gmra.mxu0 %v391
        %v441 = vpop.f32.mrf.mxu0
        %v442 = vadd.f32 %v359, %v441
        %v443 = vpop.f32.mrf.mxu0
        %v444 = vpop.f32.mrf.mxu0
        %v445 = vadd.f32 %v360, %v444
        %v446 = vpop.f32.mrf.mxu0
        %447 = vmatprep.mubr.bf16.mxu0 0
        %448 = vmatmul.mubr.bf16.gmra.mxu0 %v392
        %v449 = vpop.f32.mrf.mxu0
        %v450 = vadd.f32 %v361, %v449
        %v451 = vpop.f32.mrf.mxu0
        %v452 = vpop.f32.mrf.mxu0
        %v453 = vadd.f32 %v362, %v452
        %v454 = vpop.f32.mrf.mxu0
        %455 = vmatprep.mubr.bf16.mxu0 0
        %456 = vmatmul.mubr.bf16.gmra.mxu0 %v393
        %v457 = vpop.f32.mrf.mxu0
        %v458 = vadd.f32 %v363, %v457
        %v459 = vpop.f32.mrf.mxu0
        %v460 = vpop.f32.mrf.mxu0
        %v461 = vadd.f32 %v364, %v460
        %v462 = vpop.f32.mrf.mxu0
        %463 = vmatprep.mubr.bf16.mxu0 0
        %464 = vmatmul.mubr.bf16.gmra.mxu0 %v394
        %v465 = vpop.f32.mrf.mxu0
        %v466 = vadd.f32 %v365, %v465
        %v467 = vpop.f32.mrf.mxu0
        %v468 = vpop.f32.mrf.mxu0
        %v469 = vadd.f32 %v366, %v468
        %v470 = vpop.f32.mrf.mxu0
        %471 = vmatprep.mubr.bf16.mxu0 0
        %472 = vmatmul.mubr.bf16.gmra.mxu0 %v395
        %v473 = vpop.f32.mrf.mxu0
        %v474 = vadd.f32 %v367, %v473
        %v475 = vpop.f32.mrf.mxu0
        %v476 = vpop.f32.mrf.mxu0
        %v477 = vadd.f32 %v368, %v476
        %v478 = vpop.f32.mrf.mxu0
        %479 = vmatprep.mubr.bf16.mxu0 0
        %480 = vmatmul.mubr.bf16.gmra.mxu0 %v396
        %v481 = vpop.f32.mrf.mxu0
        %v482 = vadd.f32 %v369, %v481
        %v483 = vpop.f32.mrf.mxu0
        %v484 = vpop.f32.mrf.mxu0
        %v485 = vadd.f32 %v370, %v484
        %v486 = vpop.f32.mrf.mxu0
        %487 = vmatprep.mubr.bf16.mxu0 0
        %488 = vmatmul.mubr.bf16.gmra.mxu0 %v397
        %v489 = vpop.f32.mrf.mxu0
        %v490 = vadd.f32 %v371, %v489
        %v491 = vpop.f32.mrf.mxu0
        %v492 = vpop.f32.mrf.mxu0
        %v493 = vadd.f32 %v372, %v492
        %v494 = vpop.f32.mrf.mxu0
        %495 = vmatprep.mubr.bf16.mxu0 0
        %496 = vmatmul.mubr.bf16.gmra.mxu0 %v398
        %v497 = vpop.f32.mrf.mxu0
        %v498 = vadd.f32 %v373, %v497
        %v499 = vpop.f32.mrf.mxu0
        %v500 = vpop.f32.mrf.mxu0
        %v501 = vadd.f32 %v374, %v500
        %v502 = vpop.f32.mrf.mxu0
        %503 = vdwg.mxu0
        %504 = vmax.xlane.f32.xlu0 %v442
        %v505 = vpop.xlane.xlu0 %504
        %506 = vmax.xlane.f32.xlu0 %v445
        %v507 = vpop.xlane.xlu0 %506
        %508 = vmax.xlane.f32.xlu0 %v450
        %v509 = vpop.xlane.xlu0 %508
        %510 = vmax.xlane.f32.xlu0 %v453
        %v511 = vpop.xlane.xlu0 %510
        %512 = vmax.xlane.f32.xlu0 %v458
        %v513 = vpop.xlane.xlu0 %512
        %514 = vmax.xlane.f32.xlu0 %v461
        %v515 = vpop.xlane.xlu0 %514
        %516 = vmax.xlane.f32.xlu0 %v466
        %v517 = vpop.xlane.xlu0 %516
        %518 = vmax.xlane.f32.xlu0 %v469
        %v519 = vpop.xlane.xlu0 %518
        %520 = vmax.xlane.f32.xlu0 %v474
        %v521 = vpop.xlane.xlu0 %520
        %522 = vmax.xlane.f32.xlu0 %v477
        %v523 = vpop.xlane.xlu0 %522
        %524 = vmax.xlane.f32.xlu0 %v482
        %v525 = vpop.xlane.xlu0 %524
        %526 = vmax.xlane.f32.xlu0 %v485
        %v527 = vpop.xlane.xlu0 %526
        %528 = vmax.xlane.f32.xlu0 %v490
        %v529 = vpop.xlane.xlu0 %528
        %530 = vmax.xlane.f32.xlu0 %v493
        %v531 = vpop.xlane.xlu0 %530
        %532 = vmax.xlane.f32.xlu0 %v498
        %v533 = vpop.xlane.xlu0 %532
        %534 = vmax.xlane.f32.xlu0 %v501
        %v535 = vpop.xlane.xlu0 %534
        %v536 = vsub.f32 %v442, %v505
        %v537 = vsub.f32 %v445, %v507
        %v538 = vsub.f32 %v450, %v509
        %v539 = vsub.f32 %v453, %v511
        %v540 = vsub.f32 %v458, %v513
        %v541 = vsub.f32 %v461, %v515
        %v542 = vsub.f32 %v466, %v517
        %v543 = vsub.f32 %v469, %v519
        %v544 = vsub.f32 %v474, %v521
        %v545 = vsub.f32 %v477, %v523
        %v546 = vsub.f32 %v482, %v525
        %v547 = vsub.f32 %v485, %v527
        %v548 = vsub.f32 %v490, %v529
        %v549 = vsub.f32 %v493, %v531
        %v550 = vsub.f32 %v498, %v533
        %v551 = vsub.f32 %v501, %v535
        %v552 = vmul.f32 %v536, 1.442695
        %v553 = vpow.pop %v552
        %v554 = vmul.f32 %v537, 1.442695
        %v555 = vpow.pop %v554
        %v556 = vmul.f32 %v538, 1.442695
        %v557 = vpow.pop %v556
        %v558 = vmul.f32 %v539, 1.442695
        %v559 = vpow.pop %v558
        %v560 = vmul.f32 %v540, 1.442695
        %v561 = vpow.pop %v560
        %v562 = vmul.f32 %v541, 1.442695
        %v563 = vpow.pop %v562
        %v564 = vmul.f32 %v542, 1.442695
        %v565 = vpow.pop %v564
        %v566 = vmul.f32 %v543, 1.442695
        %v567 = vpow.pop %v566
        %v568 = vmul.f32 %v544, 1.442695
        %v569 = vpow.pop %v568
        %v570 = vmul.f32 %v545, 1.442695
        %v571 = vpow.pop %v570
        %v572 = vmul.f32 %v546, 1.442695
        %v573 = vpow.pop %v572
        %v574 = vmul.f32 %v547, 1.442695
        %v575 = vpow.pop %v574
        %v576 = vmul.f32 %v548, 1.442695
        %v577 = vpow.pop %v576
        %v578 = vmul.f32 %v549, 1.442695
        %v579 = vpow.pop %v578
        %v580 = vmul.f32 %v550, 1.442695
        %v581 = vpow.pop %v580
        %v582 = vmul.f32 %v551, 1.442695
        %v583 = vpow.pop %v582
        %584 = vadd.xlane.f32.xlu0 %v553
        %v585 = vpop.xlane.xlu0 %584
        %586 = vadd.xlane.f32.xlu0 %v555
        %v587 = vpop.xlane.xlu0 %586
        %588 = vadd.xlane.f32.xlu0 %v557
        %v589 = vpop.xlane.xlu0 %588
        %590 = vadd.xlane.f32.xlu0 %v559
        %v591 = vpop.xlane.xlu0 %590
        %592 = vadd.xlane.f32.xlu0 %v561
        %v593 = vpop.xlane.xlu0 %592
        %594 = vadd.xlane.f32.xlu0 %v563
        %v595 = vpop.xlane.xlu0 %594
        %596 = vadd.xlane.f32.xlu0 %v565
        %v597 = vpop.xlane.xlu0 %596
        %598 = vadd.xlane.f32.xlu0 %v567
        %v599 = vpop.xlane.xlu0 %598
        %600 = vadd.xlane.f32.xlu0 %v569
        %v601 = vpop.xlane.xlu0 %600
        %602 = vadd.xlane.f32.xlu0 %v571
        %v603 = vpop.xlane.xlu0 %602
        %604 = vadd.xlane.f32.xlu0 %v573
        %v605 = vpop.xlane.xlu0 %604
        %606 = vadd.xlane.f32.xlu0 %v575
        %v607 = vpop.xlane.xlu0 %606
        %608 = vadd.xlane.f32.xlu0 %v577
        %v609 = vpop.xlane.xlu0 %608
        %610 = vadd.xlane.f32.xlu0 %v579
        %v611 = vpop.xlane.xlu0 %610
        %612 = vadd.xlane.f32.xlu0 %v581
        %v613 = vpop.xlane.xlu0 %612
        %614 = vadd.xlane.f32.xlu0 %v583
        %v615 = vpop.xlane.xlu0 %614
        %v616 = vlaneseq
        %v617 = vshrl.u32 %v616, 7
        %v618 = vadd.s32 %v617, 8
        %v619 = vadd.s32 %v617, 16
        %v620 = vadd.s32 %v617, 24
        %v621 = vadd.s32 %v617, 32
        %v622 = vadd.s32 %v617, 40
        %v623 = vadd.s32 %v617, 48
        %v624 = vadd.s32 %v617, 56
        %v625 = vadd.s32 %v617, 64
        %v626 = vadd.s32 %v617, 72
        %v627 = vadd.s32 %v617, 80
        %v628 = vadd.s32 %v617, 88
        %v629 = vadd.s32 %v617, 96
        %v630 = vadd.s32 %v617, 104
        %v631 = vadd.s32 %v617, 112
        %v632 = vadd.s32 %v617, 120
        %v633 = vlaneseq
        %v634 = vand.u32 %v633, 127
        %s635 = sld [smem:[#allocation3]]
        %s636 = sadd.s32 %s635, %s27
        %s637 = smul.u32 %s636, 2654435761
        %v638 = vmul.u32 %v617, 128
        %v639 = vmul.u32 %v618, 128
        %v640 = vmul.u32 %v619, 128
        %v641 = vmul.u32 %v620, 128
        %v642 = vmul.u32 %v621, 128
        %v643 = vmul.u32 %v622, 128
        %v644 = vmul.u32 %v623, 128
        %v645 = vmul.u32 %v624, 128
        %v646 = vmul.u32 %v625, 128
        %v647 = vmul.u32 %v626, 128
        %v648 = vmul.u32 %v627, 128
        %v649 = vmul.u32 %v628, 128
        %v650 = vmul.u32 %v629, 128
        %v651 = vmul.u32 %v630, 128
        %v652 = vmul.u32 %v631, 128
        %v653 = vmul.u32 %v632, 128
        %v654 = vadd.s32 %v638, %v634
        %v655 = vadd.s32 %v639, %v634
        %v656 = vadd.s32 %v640, %v634
        %v657 = vadd.s32 %v641, %v634
        %v658 = vadd.s32 %v642, %v634
        %v659 = vadd.s32 %v643, %v634
        %v660 = vadd.s32 %v644, %v634
        %v661 = vadd.s32 %v645, %v634
        %v662 = vadd.s32 %v646, %v634
        %v663 = vadd.s32 %v647, %v634
        %v664 = vadd.s32 %v648, %v634
        %v665 = vadd.s32 %v649, %v634
        %v666 = vadd.s32 %v650, %v634
        %v667 = vadd.s32 %v651, %v634
        %v668 = vadd.s32 %v652, %v634
        %v669 = vadd.s32 %v653, %v634
        %v670 = vstv %s637
        %v671 = vadd.s32 %v654, %v670
        %v672 = vadd.s32 %v655, %v670
        %v673 = vadd.s32 %v656, %v670
        %v674 = vadd.s32 %v657, %v670
        %v675 = vadd.s32 %v658, %v670
        %v676 = vadd.s32 %v659, %v670
        %v677 = vadd.s32 %v660, %v670
        %v678 = vadd.s32 %v661, %v670
        %v679 = vadd.s32 %v662, %v670
        %v680 = vadd.s32 %v663, %v670
        %v681 = vadd.s32 %v664, %v670
        %v682 = vadd.s32 %v665, %v670
        %v683 = vadd.s32 %v666, %v670
        %v684 = vadd.s32 %v667, %v670
        %v685 = vadd.s32 %v668, %v670
        %v686 = vadd.s32 %v669, %v670
        %v687 = vshrl.u32 %v671, 16
        %v688 = vshrl.u32 %v672, 16
        %v689 = vshrl.u32 %v673, 16
        %v690 = vshrl.u32 %v674, 16
        %v691 = vshrl.u32 %v675, 16
        %v692 = vshrl.u32 %v676, 16
        %v693 = vshrl.u32 %v677, 16
        %v694 = vshrl.u32 %v678, 16
        %v695 = vshrl.u32 %v679, 16
        %v696 = vshrl.u32 %v680, 16
        %v697 = vshrl.u32 %v681, 16
        %v698 = vshrl.u32 %v682, 16
        %v699 = vshrl.u32 %v683, 16
        %v700 = vshrl.u32 %v684, 16
        %v701 = vshrl.u32 %v685, 16
        %v702 = vshrl.u32 %v686, 16
        %v703 = vxor.u32 %v671, %v687
        %v704 = vxor.u32 %v672, %v688
        %v705 = vxor.u32 %v673, %v689
        %v706 = vxor.u32 %v674, %v690
        %v707 = vxor.u32 %v675, %v691
        %v708 = vxor.u32 %v676, %v692
        %v709 = vxor.u32 %v677, %v693
        %v710 = vxor.u32 %v678, %v694
        %v711 = vxor.u32 %v679, %v695
        %v712 = vxor.u32 %v680, %v696
        %v713 = vxor.u32 %v681, %v697
        %v714 = vxor.u32 %v682, %v698
        %v715 = vxor.u32 %v683, %v699
        %v716 = vxor.u32 %v684, %v700
        %v717 = vxor.u32 %v685, %v701
        %v718 = vxor.u32 %v686, %v702
        %v719 = vmul.u32 %v703, 2146121005
        %v720 = vmul.u32 %v704, 2146121005
        %v721 = vmul.u32 %v705, 2146121005
        %v722 = vmul.u32 %v706, 2146121005
        %v723 = vmul.u32 %v707, 2146121005
        %v724 = vmul.u32 %v708, 2146121005
        %v725 = vmul.u32 %v709, 2146121005
        %v726 = vmul.u32 %v710, 2146121005
        %v727 = vmul.u32 %v711, 2146121005
        %v728 = vmul.u32 %v712, 2146121005
        %v729 = vmul.u32 %v713, 2146121005
        %v730 = vmul.u32 %v714, 2146121005
        %v731 = vmul.u32 %v715, 2146121005
        %v732 = vmul.u32 %v716, 2146121005
        %v733 = vmul.u32 %v717, 2146121005
        %v734 = vmul.u32 %v718, 2146121005
        %v735 = vshrl.u32 %v719, 15
        %v736 = vshrl.u32 %v720, 15
        %v737 = vshrl.u32 %v721, 15
        %v738 = vshrl.u32 %v722, 15
        %v739 = vshrl.u32 %v723, 15
        %v740 = vshrl.u32 %v724, 15
        %v741 = vshrl.u32 %v725, 15
        %v742 = vshrl.u32 %v726, 15
        %v743 = vshrl.u32 %v727, 15
        %v744 = vshrl.u32 %v728, 15
        %v745 = vshrl.u32 %v729, 15
        %v746 = vshrl.u32 %v730, 15
        %v747 = vshrl.u32 %v731, 15
        %v748 = vshrl.u32 %v732, 15
        %v749 = vshrl.u32 %v733, 15
        %v750 = vshrl.u32 %v734, 15
        %v751 = vxor.u32 %v719, %v735
        %v752 = vxor.u32 %v720, %v736
        %v753 = vxor.u32 %v721, %v737
        %v754 = vxor.u32 %v722, %v738
        %v755 = vxor.u32 %v723, %v739
        %v756 = vxor.u32 %v724, %v740
        %v757 = vxor.u32 %v725, %v741
        %v758 = vxor.u32 %v726, %v742
        %v759 = vxor.u32 %v727, %v743
        %v760 = vxor.u32 %v728, %v744
        %v761 = vxor.u32 %v729, %v745
        %v762 = vxor.u32 %v730, %v746
        %v763 = vxor.u32 %v731, %v747
        %v764 = vxor.u32 %v732, %v748
        %v765 = vxor.u32 %v733, %v749
        %v766 = vxor.u32 %v734, %v750
        %v767 = vmul.u32 %v751, 2221713035
        %v768 = vmul.u32 %v752, 2221713035
        %v769 = vmul.u32 %v753, 2221713035
        %v770 = vmul.u32 %v754, 2221713035
        %v771 = vmul.u32 %v755, 2221713035
        %v772 = vmul.u32 %v756, 2221713035
        %v773 = vmul.u32 %v757, 2221713035
        %v774 = vmul.u32 %v758, 2221713035
        %v775 = vmul.u32 %v759, 2221713035
        %v776 = vmul.u32 %v760, 2221713035
        %v777 = vmul.u32 %v761, 2221713035
        %v778 = vmul.u32 %v762, 2221713035
        %v779 = vmul.u32 %v763, 2221713035
        %v780 = vmul.u32 %v764, 2221713035
        %v781 = vmul.u32 %v765, 2221713035
        %v782 = vmul.u32 %v766, 2221713035
        %v783 = vshrl.u32 %v767, 16
        %v784 = vshrl.u32 %v768, 16
        %v785 = vshrl.u32 %v769, 16
        %v786 = vshrl.u32 %v770, 16
        %v787 = vshrl.u32 %v771, 16
        %v788 = vshrl.u32 %v772, 16
        %v789 = vshrl.u32 %v773, 16
        %v790 = vshrl.u32 %v774, 16
        %v791 = vshrl.u32 %v775, 16
        %v792 = vshrl.u32 %v776, 16
        %v793 = vshrl.u32 %v777, 16
        %v794 = vshrl.u32 %v778, 16
        %v795 = vshrl.u32 %v779, 16
        %v796 = vshrl.u32 %v780, 16
        %v797 = vshrl.u32 %v781, 16
        %v798 = vshrl.u32 %v782, 16
        %v799 = vxor.u32 %v767, %v783
        %v800 = vxor.u32 %v768, %v784
        %v801 = vxor.u32 %v769, %v785
        %v802 = vxor.u32 %v770, %v786
        %v803 = vxor.u32 %v771, %v787
        %v804 = vxor.u32 %v772, %v788
        %v805 = vxor.u32 %v773, %v789
        %v806 = vxor.u32 %v774, %v790
        %v807 = vxor.u32 %v775, %v791
        %v808 = vxor.u32 %v776, %v792
        %v809 = vxor.u32 %v777, %v793
        %v810 = vxor.u32 %v778, %v794
        %v811 = vxor.u32 %v779, %v795
        %v812 = vxor.u32 %v780, %v796
        %v813 = vxor.u32 %v781, %v797
        %v814 = vxor.u32 %v782, %v798
        %vm815 = vcmp.ge.u32.totalorder %v799, 2576980377
        %vm816 = vcmp.ge.u32.totalorder %v800, 2576980377
        %vm817 = vcmp.ge.u32.totalorder %v801, 2576980377
        %vm818 = vcmp.ge.u32.totalorder %v802, 2576980377
        %vm819 = vcmp.ge.u32.totalorder %v803, 2576980377
        %vm820 = vcmp.ge.u32.totalorder %v804, 2576980377
        %vm821 = vcmp.ge.u32.totalorder %v805, 2576980377
        %vm822 = vcmp.ge.u32.totalorder %v806, 2576980377
        %vm823 = vcmp.ge.u32.totalorder %v807, 2576980377
        %vm824 = vcmp.ge.u32.totalorder %v808, 2576980377
        %vm825 = vcmp.ge.u32.totalorder %v809, 2576980377
        %vm826 = vcmp.ge.u32.totalorder %v810, 2576980377
        %vm827 = vcmp.ge.u32.totalorder %v811, 2576980377
        %vm828 = vcmp.ge.u32.totalorder %v812, 2576980377
        %vm829 = vcmp.ge.u32.totalorder %v813, 2576980377
        %vm830 = vcmp.ge.u32.totalorder %v814, 2576980377
        %v831 = vrcp.pop %v585
        %v832 = vmul.f32 1.0, %v831
        %v833 = vrcp.pop %v587
        %v834 = vmul.f32 1.0, %v833
        %v835 = vrcp.pop %v589
        %v836 = vmul.f32 1.0, %v835
        %v837 = vrcp.pop %v591
        %v838 = vmul.f32 1.0, %v837
        %v839 = vrcp.pop %v593
        %v840 = vmul.f32 1.0, %v839
        %v841 = vrcp.pop %v595
        %v842 = vmul.f32 1.0, %v841
        %v843 = vrcp.pop %v597
        %v844 = vmul.f32 1.0, %v843
        %v845 = vrcp.pop %v599
        %v846 = vmul.f32 1.0, %v845
        %v847 = vrcp.pop %v601
        %v848 = vmul.f32 1.0, %v847
        %v849 = vrcp.pop %v603
        %v850 = vmul.f32 1.0, %v849
        %v851 = vrcp.pop %v605
        %v852 = vmul.f32 1.0, %v851
        %v853 = vrcp.pop %v607
        %v854 = vmul.f32 1.0, %v853
        %v855 = vrcp.pop %v609
        %v856 = vmul.f32 1.0, %v855
        %v857 = vrcp.pop %v611
        %v858 = vmul.f32 1.0, %v857
        %v859 = vrcp.pop %v613
        %v860 = vmul.f32 1.0, %v859
        %v861 = vrcp.pop %v615
        %v862 = vmul.f32 1.0, %v861
        %v863 = vmul.f32 %v832, 2.5
        %v864 = vmul.f32 %v834, 2.5
        %v865 = vmul.f32 %v836, 2.5
        %v866 = vmul.f32 %v838, 2.5
        %v867 = vmul.f32 %v840, 2.5
        %v868 = vmul.f32 %v842, 2.5
        %v869 = vmul.f32 %v844, 2.5
        %v870 = vmul.f32 %v846, 2.5
        %v871 = vmul.f32 %v848, 2.5
        %v872 = vmul.f32 %v850, 2.5
        %v873 = vmul.f32 %v852, 2.5
        %v874 = vmul.f32 %v854, 2.5
        %v875 = vmul.f32 %v856, 2.5
        %v876 = vmul.f32 %v858, 2.5
        %v877 = vmul.f32 %v860, 2.5
        %v878 = vmul.f32 %v862, 2.5
        %v879 = vmul.f32 %v553, %v863
        %v880 = vmul.f32 %v555, %v864
        %v881 = vmul.f32 %v557, %v865
        %v882 = vmul.f32 %v559, %v866
        %v883 = vmul.f32 %v561, %v867
        %v884 = vmul.f32 %v563, %v868
        %v885 = vmul.f32 %v565, %v869
        %v886 = vmul.f32 %v567, %v870
        %v887 = vmul.f32 %v569, %v871
        %v888 = vmul.f32 %v571, %v872
        %v889 = vmul.f32 %v573, %v873
        %v890 = vmul.f32 %v575, %v874
        %v891 = vmul.f32 %v577, %v875
        %v892 = vmul.f32 %v579, %v876
        %v893 = vmul.f32 %v581, %v877
        %v894 = vmul.f32 %v583, %v878
        %v895 = vsel %vm815, %v879, 0.0
        %v896 = vsel %vm816, %v880, 0.0
        %v897 = vsel %vm817, %v881, 0.0
        %v898 = vsel %vm818, %v882, 0.0
        %v899 = vsel %vm819, %v883, 0.0
        %v900 = vsel %vm820, %v884, 0.0
        %v901 = vsel %vm821, %v885, 0.0
        %v902 = vsel %vm822, %v886, 0.0
        %v903 = vsel %vm823, %v887, 0.0
        %v904 = vsel %vm824, %v888, 0.0
        %v905 = vsel %vm825, %v889, 0.0
        %v906 = vsel %vm826, %v890, 0.0
        %v907 = vsel %vm827, %v891, 0.0
        %v908 = vsel %vm828, %v892, 0.0
        %v909 = vsel %vm829, %v893, 0.0
        %v910 = vsel %vm830, %v894, 0.0
        %v911 = vpack.c.bf16 %v896, %v895
        %v912 = vpack.c.bf16 %v898, %v897
        %v913 = vpack.c.bf16 %v900, %v899
        %v914 = vpack.c.bf16 %v902, %v901
        %v915 = vpack.c.bf16 %v904, %v903
        %v916 = vpack.c.bf16 %v906, %v905
        %v917 = vpack.c.bf16 %v908, %v907
        %v918 = vpack.c.bf16 %v910, %v909
        %v919 = vpack.c.bf16 %v344, %v343
        %v920 = vpack.c.bf16 %v346, %v345
        %v921 = vpack.c.bf16 %v348, %v347
        %v922 = vpack.c.bf16 %v350, %v349
        %v923 = vpack.c.bf16 %v352, %v351
        %v924 = vpack.c.bf16 %v354, %v353
        %v925 = vpack.c.bf16 %v356, %v355
        %v926 = vpack.c.bf16 %v358, %v357
        %927 = vmatprep.subr.bf16.mxu0 0
        %928 = vmatpush1.bf16.msra.mxu0 %v926
        %929 = vmatprep.subr.bf16.mxu0 0
        %930 = vmatpush1.bf16.msra.mxu0 %v925
        %931 = vmatprep.subr.bf16.mxu0 0
        %932 = vmatpush1.bf16.msra.mxu0 %v924
        %933 = vmatprep.subr.bf16.mxu0 0
        %934 = vmatpush1.bf16.msra.mxu0 %v923
        %935 = vmatprep.subr.bf16.mxu0 0
        %936 = vmatpush1.bf16.msra.mxu0 %v922
        %937 = vmatprep.subr.bf16.mxu0 0
        %938 = vmatpush1.bf16.msra.mxu0 %v921
        %939 = vmatprep.subr.bf16.mxu0 0
        %940 = vmatpush1.bf16.msra.mxu0 %v920
        %941 = vmatprep.subr.bf16.mxu0 0
        %942 = vmatpush1.bf16.msra.mxu0 %v919
        %943 = vmatprep.subr.bf16.mxu0 0
        %944 = vmatpush2.bf16.msra.mxu0 0
        %945 = vmatprep.subr.bf16.mxu0 0
        %946 = vmatpush2.bf16.msra.mxu0 0
        %947 = vmatprep.subr.bf16.mxu0 0
        %948 = vmatpush2.bf16.msra.mxu0 0
        %949 = vmatprep.subr.bf16.mxu0 0
        %950 = vmatpush2.bf16.msra.mxu0 0
        %951 = vmatprep.subr.bf16.mxu0 0
        %952 = vmatpush2.bf16.msra.mxu0 0
        %953 = vmatprep.subr.bf16.mxu0 0
        %954 = vmatpush2.bf16.msra.mxu0 0
        %955 = vmatprep.subr.bf16.mxu0 0
        %956 = vmatpush2.bf16.msra.mxu0 0
        %957 = vmatprep.subr.bf16.mxu0 0
        %958 = vmatpush2.bf16.msra.mxu0 0
        %959 = vmatprep.mubr.bf16.mxu0 0
        %960 = vmatmul.mubr.bf16.gmra.mxu0 %v911
        %v961 = vpop.f32.mrf.mxu0
        %v962 = vadd.f32 0.0, %v961
        %v963 = vpop.f32.mrf.mxu0
        %v964 = vpop.f32.mrf.mxu0
        %v965 = vadd.f32 0.0, %v964
        %v966 = vpop.f32.mrf.mxu0
        %967 = vmatprep.mubr.bf16.mxu0 0
        %968 = vmatmul.mubr.bf16.gmra.mxu0 %v912
        %v969 = vpop.f32.mrf.mxu0
        %v970 = vadd.f32 0.0, %v969
        %v971 = vpop.f32.mrf.mxu0
        %v972 = vpop.f32.mrf.mxu0
        %v973 = vadd.f32 0.0, %v972
        %v974 = vpop.f32.mrf.mxu0
        %975 = vmatprep.mubr.bf16.mxu0 0
        %976 = vmatmul.mubr.bf16.gmra.mxu0 %v913
        %v977 = vpop.f32.mrf.mxu0
        %v978 = vadd.f32 0.0, %v977
        %v979 = vpop.f32.mrf.mxu0
        %v980 = vpop.f32.mrf.mxu0
        %v981 = vadd.f32 0.0, %v980
        %v982 = vpop.f32.mrf.mxu0
        %983 = vmatprep.mubr.bf16.mxu0 0
        %984 = vmatmul.mubr.bf16.gmra.mxu0 %v914
        %v985 = vpop.f32.mrf.mxu0
        %v986 = vadd.f32 0.0, %v985
        %v987 = vpop.f32.mrf.mxu0
        %v988 = vpop.f32.mrf.mxu0
        %v989 = vadd.f32 0.0, %v988
        %v990 = vpop.f32.mrf.mxu0
        %991 = vmatprep.mubr.bf16.mxu0 0
        %992 = vmatmul.mubr.bf16.gmra.mxu0 %v915
        %v993 = vpop.f32.mrf.mxu0
        %v994 = vadd.f32 0.0, %v993
        %v995 = vpop.f32.mrf.mxu0
        %v996 = vpop.f32.mrf.mxu0
        %v997 = vadd.f32 0.0, %v996
        %v998 = vpop.f32.mrf.mxu0
        %999 = vmatprep.mubr.bf16.mxu0 0
        %1000 = vmatmul.mubr.bf16.gmra.mxu0 %v916
        %v1001 = vpop.f32.mrf.mxu0
        %v1002 = vadd.f32 0.0, %v1001
        %v1003 = vpop.f32.mrf.mxu0
        %v1004 = vpop.f32.mrf.mxu0
        %v1005 = vadd.f32 0.0, %v1004
        %v1006 = vpop.f32.mrf.mxu0
        %1007 = vmatprep.mubr.bf16.mxu0 0
        %1008 = vmatmul.mubr.bf16.gmra.mxu0 %v917
        %v1009 = vpop.f32.mrf.mxu0
        %v1010 = vadd.f32 0.0, %v1009
        %v1011 = vpop.f32.mrf.mxu0
        %v1012 = vpop.f32.mrf.mxu0
        %v1013 = vadd.f32 0.0, %v1012
        %v1014 = vpop.f32.mrf.mxu0
        %1015 = vmatprep.mubr.bf16.mxu0 0
        %1016 = vmatmul.mubr.bf16.gmra.mxu0 %v918
        %v1017 = vpop.f32.mrf.mxu0
        %v1018 = vadd.f32 0.0, %v1017
        %v1019 = vpop.f32.mrf.mxu0
        %v1020 = vpop.f32.mrf.mxu0
        %v1021 = vadd.f32 0.0, %v1020
        %v1022 = vpop.f32.mrf.mxu0
        %1023 = vdwg.mxu0
        %1024 = vst [vmem:[%s309] sm:$0xff] %v962
        %1025 = vst [vmem:[%s309 + $0x8] sm:$0xff] %v965
        %1026 = vst [vmem:[%s309 + $0x10] sm:$0xff] %v970
        %1027 = vst [vmem:[%s309 + $0x18] sm:$0xff] %v973
        %1028 = vst [vmem:[%s309 + $0x20] sm:$0xff] %v978
        %1029 = vst [vmem:[%s309 + $0x28] sm:$0xff] %v981
        %1030 = vst [vmem:[%s309 + $0x30] sm:$0xff] %v986
        %1031 = vst [vmem:[%s309 + $0x38] sm:$0xff] %v989
        %1032 = vst [vmem:[%s309 + $0x40] sm:$0xff] %v994
        %1033 = vst [vmem:[%s309 + $0x48] sm:$0xff] %v997
        %1034 = vst [vmem:[%s309 + $0x50] sm:$0xff] %v1002
        %1035 = vst [vmem:[%s309 + $0x58] sm:$0xff] %v1005
        %1036 = vst [vmem:[%s309 + $0x60] sm:$0xff] %v1010
        %1037 = vst [vmem:[%s309 + $0x68] sm:$0xff] %v1013
        %1038 = vst [vmem:[%s309 + $0x70] sm:$0xff] %v1018
        %1039 = vst [vmem:[%s309 + $0x78] sm:$0xff] %v1021
        %s1040 = sand.u32 %s134, 1
        %s1041 = scalar_lea.sflag [#allocation6], %s1040
        %s1042 = sand.u32 %s134, 1
        %s1043 = smul.addr %s1042, 128
        %s1044 = scalar_lea.vmem [#allocation12], %s1043
        // Predicated region
        $region53: #{tpu_custom_call.1} parent=35 // pred_check
          %p1045 = pneg %p144
        $region54: #{tpu_custom_call.1} parent=35 // pred_check_branch
          %1047 = sbr.rel (%p1045) target = $region56
        $region55: #{tpu_custom_call.1} parent=35 // pred_region
          %s1049 = ssub.s32 2048, 2048
          %1050 = vsyncadd %s1041, %s1049
          %s1051 = smul.addr %s27, 16
          %s1052 = smul.addr %s1051, 128
          %s1053 = scalar_lea.hbm %s5, %s1052
          %s1054 = sshll.u32 %s1044, 4
          %s1055 = int_to_ptr.vmem [resolvable:$true] %s1054
          %1060 = dma.vmem_to_hbm [thread:$0]  %s1055, 2048, %s1053, %s1041, 128, 128, 8
        $region56: #{tpu_custom_call.1} parent=35 // pred_fallthru
          _
      $region36: #{tpu_custom_call.1} parent=5 // pred_fallthru
        _
      %p1061 = scmp.le.s32.totalorder 2, %s22
      // Predicated region
      $region57: #{tpu_custom_call.1} parent=5 // pred_check
        %p1062 = pneg %p1061
      $region58: #{tpu_custom_call.1} parent=5 // pred_check_branch
        %1064 = sbr.rel (%p1062) target = $region60
      $region59: #{tpu_custom_call.1} parent=5 // pred_region
        %s1065 = ssub.s32 %s22, 2
        // Predicated region
        $region61: #{tpu_custom_call.1} parent=59 // pred_check
          %p1066 = pneg %p150
        $region62: #{tpu_custom_call.1} parent=59 // pred_check_branch
          %1068 = sbr.rel (%p1066) target = $region64
        $region63: #{tpu_custom_call.1} parent=59 // pred_region
          %s1069 = sand.u32 %s135, 1
          %s1070 = scalar_lea.sflag [#allocation6], %s1069
          %s1071 = sand.u32 %s135, 1
          %s1072 = smul.addr %s1071, 128
          %s1073 = scalar_lea.vmem [#allocation12], %s1072
          %1074 = dma.done %s1070, 2048
        $region64: #{tpu_custom_call.1} parent=59 // pred_fallthru
          _
      $region60: #{tpu_custom_call.1} parent=5 // pred_fallthru
        _
    $region6: #{tpu_custom_call.1} parent=1 // loop_footer
      %s26 = sadd.s32 1, %s22
    $region7: #{tpu_custom_call.1} parent=1 // loop_footer_branch
      %21 = sbr.rel target = $region3
    $region8: #{tpu_custom_call.1} parent=1 // loop_exit
      _
    %1075 = vsyncpa [#allocation5], 1
    %s1076 = scalar_lea.sflag [#allocation5], 1
    %1077 = vsyncpa %s1076, 1
    %1078 = vsyncpa [#allocation8], 1
    %s1079 = scalar_lea.sflag [#allocation8], 1
    %1080 = vsyncpa %s1079, 1
    %1081 = vsyncpa [#allocation11], 1
    %1082 = vsyncpa [#allocation6], 1
    %s1083 = scalar_lea.sflag [#allocation6], 1
    %1084 = vsyncpa %s1083, 1

</llo_original>
